<compile_context>
chip_gen: v5e
topology: v5e:2x2
jax: 0.10.0
libtpu: 0.0.40
codegen_flags: <defaults>
</compile_context>

<pallas_src>
import math

import jax
import jax.numpy as jnp
import numpy as np
from jax.experimental import pallas as pl
from jax.experimental.pallas import tpu as pltpu


def _round_up(n, m):
    return ((n + m - 1) // m) * m


# ----------------------------------------------------------------------------- kernel
def mlp_kernel(x_ref, w1t_ref, w2t_ref, b_ref, o_ref):
    x = x_ref[...]                                   # (tm, Din) f32
    w_dtype = w1t_ref.dtype                          # bf16 (or f32)

    # linear1 on the MXU: bf16 operands, f32 accumulate
    h = jnp.dot(x.astype(w_dtype), w1t_ref[...],
                preferred_element_type=jnp.float32)
    h = h + b_ref[0:1, :]                            # bias in f32 (VPU)
    h = jnp.maximum(h, 0.0)                          # ReLU in f32 (VPU)

    # linear2 on the MXU
    y = jnp.dot(h.astype(w_dtype), w2t_ref[...],
                preferred_element_type=jnp.float32)
    y = y + b_ref[1:2, :]

    o_ref[...] = y.astype(o_ref.dtype)


# ----------------------------------------------------------------------------- pallas_call builder
def _pallas_mlp(x2d, w1t, w2t, b_stack, *, tm, grid, cost, vmem_limit,
                use_buffered):
    n_pad, d_in = x2d.shape
    d_out = w2t.shape[1]
    # weights / biases have constant index maps -> ask for single buffering so
    # they stay resident once in VMEM instead of being double-buffered.
    res_kw = {"pipeline_mode": pl.Buffered(1)} if use_buffered else {}

    return pl.pallas_call(
        mlp_kernel,
        out_shape=jax.ShapeDtypeStruct((n_pad, d_out), x2d.dtype),
        grid_spec=pltpu.PrefetchScalarGridSpec(
            num_scalar_prefetch=0,
            grid=grid,
            in_specs=[
                pl.BlockSpec((tm, d_in), lambda i: (i, 0)),               # x tile
                pl.BlockSpec((d_in, d_out), lambda i: (0, 0), **res_kw),  # W1^T
                pl.BlockSpec((d_out, d_out), lambda i: (0, 0), **res_kw), # W2^T
                pl.BlockSpec((2, d_out), lambda i: (0, 0), **res_kw),     # [b1; b2]
            ],
            out_specs=pl.BlockSpec((tm, d_out), lambda i: (i, 0)),
        ),
        compiler_params=pltpu.CompilerParams(
            dimension_semantics=("parallel",),
            vmem_limit_bytes=vmem_limit,
        ),
        cost_estimate=cost,
    )(x2d, w1t, w2t, b_stack)


# ----------------------------------------------------------------------------- wrapper
def mlp_forward(x, params, *, tile_rows=256, matmul_dtype=jnp.bfloat16):
    """x: (..., in_dim) float32.  params: dict from init_params."""
    *lead, d_in = x.shape
    d_out = params["w1"].shape[0]
    n = 1
    for s in lead:
        n *= s
    x2d = x.reshape(n, d_in).astype(jnp.float32)

    # weights pre-transposed to (in, out); matmul operands in bf16, biases f32.
    w1t = params["w1"].T.astype(matmul_dtype)                     # (Din, D)
    w2t = params["w2"].T.astype(matmul_dtype)                     # (D,   D)
    b_stack = jnp.stack([params["b1"], params["b2"]]).astype(jnp.float32)  # (2, D)

    itemsize_w = np.dtype(matmul_dtype).itemsize
    bytes_weights = (d_in * d_out + d_out * d_out) * itemsize_w
    bytes_bias = 2 * d_out * 4

    # --- pick the row-tile size: as large as possible within a VMEM budget ---
    tm = min(tile_rows, _round_up(n, 8))
    vmem_cap = 48 * 1024 * 1024  # conservative: leaves headroom on v7x (64 MiB)
    while tm > 8 and (2 * (bytes_weights + bytes_bias)
                      + 4 * tm * (d_in + d_out) * 4) > vmem_cap:
        tm //= 2
    tm = max(8, _round_up(tm, 8))
    # keep >= 2 grid steps when possible so v7x's two TensorCores both run.
    if pl.cdiv(n, tm) < 2 and n > 8:
        tm = max(8, _round_up(pl.cdiv(n, 2), 8))

    n_pad = _round_up(n, tm)
    if n_pad != n:
        x2d = jnp.pad(x2d, ((0, n_pad - n), (0, 0)))
    grid = (n_pad // tm,)

    # explicit VMEM budget (x tile + out tile double-buffered, weights resident)
    bytes_tiles = 2 * tm * (d_in + d_out) * 4
    vmem_limit = int(min(64 * 1024 * 1024,
                         max(16 * 1024 * 1024,
                             2 * (bytes_weights + bytes_bias) + 2 * bytes_tiles)))

    cost = pl.CostEstimate(
        flops=2 * n_pad * d_in * d_out + 2 * n_pad * d_out * d_out,
        transcendentals=0,
        bytes_accessed=n_pad * (d_in + d_out) * 4 + bytes_weights + bytes_bias,
    )

    call_kwargs = dict(tm=tm, grid=grid, cost=cost, vmem_limit=vmem_limit)
    try:
        out = _pallas_mlp(x2d, w1t, w2t, b_stack, use_buffered=True,
                          **call_kwargs)
    except Exception:
        # this jax build rejected pipeline_mode=pl.Buffered(1); fall back to
        # default (double-buffered) weight blocks.
        out = _pallas_mlp(x2d, w1t, w2t, b_stack, use_buffered=False,
                          **call_kwargs)

    if n_pad != n:
        out = out[:n]
    return out.reshape(*lead, d_out)


# ----------------------------------------------------------------------------- params & reference
def init_params(key, in_dim, out_dim=None):
    # Matches nn.Linear defaults: W, b ~ U(-1/sqrt(fan_in), 1/sqrt(fan_in)).
    if out_dim is None:
        out_dim = in_dim
    k1, k2, k3, k4 = jax.random.split(key, 4)
    b1 = 1.0 / math.sqrt(in_dim)
    b2 = 1.0 / math.sqrt(out_dim)
    return {
        "w1": jax.random.uniform(k1, (out_dim, in_dim), jnp.float32, -b1, b1),
        "b1": jax.random.uniform(k2, (out_dim,), jnp.float32, -b1, b1),
        "w2": jax.random.uniform(k3, (out_dim, out_dim), jnp.float32, -b2, b2),
        "b2": jax.random.uniform(k4, (out_dim,), jnp.float32, -b2, b2),
    }


def mlp_reference(x, params, matmul_dtype=jnp.float32):
    # Pure-JAX reference. With matmul_dtype=bf16 it replicates the kernel's
    # mixed-precision math; with f32 it is the exact PyTorch-module semantics.
    w1t = params["w1"].T.astype(matmul_dtype)
    w2t = params["w2"].T.astype(matmul_dtype)
    h = jnp.dot(x.astype(matmul_dtype), w1t,
                preferred_element_type=jnp.float32) + params["b1"]
    h = jnp.maximum(h, 0.0)
    y = jnp.dot(h.astype(matmul_dtype), w2t,
                preferred_element_type=jnp.float32) + params["b2"]
    return y


# ----------------------------------------------------------------------------- demo / self-test
if __name__ == "__main__":
    key = jax.random.PRNGKey(0)
    kx, kp = jax.random.split(key)

    B, S, in_dim, out_dim = 2, 9, 128, 256   # S=9 exercises the padded-tail path
    x = jax.random.normal(kx, (B, S, in_dim), jnp.float32)
    params = init_params(kp, in_dim, out_dim)

    y = mlp_forward(x, params)
    y = jax.block_until_ready(y)
    assert y.shape == (B, S, out_dim)

    # strict check vs a reference using identical mixed precision
    y_ref_matched = mlp_reference(x, params, matmul_dtype=jnp.bfloat16)
    assert jnp.allclose(y, y_ref_matched, atol=1e-3, rtol=1e-3), \
        "mismatch vs matched-precision reference"

    # looser check vs the pure f32 module semantics
    y_ref_f32 = mlp_reference(x, params, matmul_dtype=jnp.float32)
    assert jnp.allclose(y, y_ref_f32, atol=5e-2, rtol=5e-2), \
        "mismatch vs f32 reference"

    print("KERNEL_OK")
</pallas_src>

<mosaic_0001>
module attributes {stable_mosaic.version = 11 : i64} {
  func.func @mlp_kernel(%arg0: i32, %arg1: memref<16x128xf32, #tpu.memory_space<vmem>>, %arg2: memref<128x256xbf16, #tpu.memory_space<vmem>>, %arg3: memref<256x256xbf16, #tpu.memory_space<vmem>>, %arg4: memref<2x256xf32, #tpu.memory_space<vmem>>, %arg5: memref<16x256xf32, #tpu.memory_space<vmem>>) attributes {dimension_semantics = [#tpu.dimension_semantics<parallel>], iteration_bounds = array<i64: 2>, scalar_prefetch = 0 : i64, scratch_operands = 0 : i64, tpu.core_type = #tpu.core_type<tc>, window_params = [{transform_indices = @transform_0, window_bounds = array<i64: 16, 128>}, {pipeline_mode = #tpu.pipeline_mode<synchronous>, transform_indices = @transform_1, window_bounds = array<i64: 128, 256>}, {pipeline_mode = #tpu.pipeline_mode<synchronous>, transform_indices = @transform_2, window_bounds = array<i64: 256, 256>}, {pipeline_mode = #tpu.pipeline_mode<synchronous>, transform_indices = @transform_3, window_bounds = array<i64: 2, 256>}, {transform_indices = @transform_4, window_bounds = array<i64: 16, 256>}]} {
    %c0 = arith.constant 0 : index
    %c0_0 = arith.constant 0 : index
    %0 = vector.load %arg1[%c0, %c0_0] : memref<16x128xf32, #tpu.memory_space<vmem>>, vector<16x128xf32>
    %1 = arith.truncf %0 : vector<16x128xf32> to vector<16x128xbf16>
    %c0_1 = arith.constant 0 : index
    %c0_2 = arith.constant 0 : index
    %2 = vector.load %arg2[%c0_1, %c0_2] : memref<128x256xbf16, #tpu.memory_space<vmem>>, vector<128x256xbf16>
    %cst = arith.constant dense<0.000000e+00> : vector<16x256xf32>
    %3 = tpu.matmul %1, %2, %cst {dimension_numbers = #tpu.dot_dimension_numbers<[1], [0], [0], [1], [0, 0, 1, 1], [], []>} : vector<16x128xbf16>, vector<128x256xbf16>, vector<16x256xf32> -> vector<16x256xf32>
    %c0_3 = arith.constant 0 : index
    %c0_4 = arith.constant 0 : index
    %4 = vector.load %arg4[%c0_3, %c0_4] : memref<2x256xf32, #tpu.memory_space<vmem>>, vector<1x256xf32>
    %5 = vector.broadcast %4 : vector<1x256xf32> to vector<16x256xf32>
    %6 = arith.addf %3, %5 : vector<16x256xf32>
    %cst_5 = arith.constant 0.000000e+00 : f32
    %7 = vector.broadcast %cst_5 : f32 to vector<16x256xf32>
    %8 = arith.maximumf %6, %7 : vector<16x256xf32>
    %9 = arith.truncf %8 : vector<16x256xf32> to vector<16x256xbf16>
    %c0_6 = arith.constant 0 : index
    %c0_7 = arith.constant 0 : index
    %10 = vector.load %arg3[%c0_6, %c0_7] : memref<256x256xbf16, #tpu.memory_space<vmem>>, vector<256x256xbf16>
    %cst_8 = arith.constant dense<0.000000e+00> : vector<16x256xf32>
    %11 = tpu.matmul %9, %10, %cst_8 {dimension_numbers = #tpu.dot_dimension_numbers<[1], [0], [0], [1], [0, 0, 1, 1], [], []>} : vector<16x256xbf16>, vector<256x256xbf16>, vector<16x256xf32> -> vector<16x256xf32>
    %c1 = arith.constant 1 : index
    %c0_9 = arith.constant 0 : index
    %12 = vector.load %arg4[%c1, %c0_9] : memref<2x256xf32, #tpu.memory_space<vmem>>, vector<1x256xf32>
    %13 = vector.broadcast %12 : vector<1x256xf32> to vector<16x256xf32>
    %14 = arith.addf %11, %13 : vector<16x256xf32>
    %c0_10 = arith.constant 0 : index
    %c0_11 = arith.constant 0 : index
    %15 = vector.load %arg5[%c0_10, %c0_11] : memref<16x256xf32, #tpu.memory_space<vmem>>, vector<16x256xf32>
    tpu.vector_store %arg5[%c0_10, %c0_11], %14 {strides = array<i32>} : memref<16x256xf32, #tpu.memory_space<vmem>>, vector<16x256xf32>,
    return
  }
  func.func @transform_0(%arg0: i32) -> (i32, i32) {
    %c0_i32 = arith.constant 0 : i32
    %c0_i32_0 = arith.constant 0 : i32
    return %arg0, %c0_i32 : i32, i32
  }
  func.func @transform_1(%arg0: i32) -> (i32, i32) {
    %c0_i32 = arith.constant 0 : i32
    %c0_i32_0 = arith.constant 0 : i32
    %c0_i32_1 = arith.constant 0 : i32
    return %c0_i32, %c0_i32_0 : i32, i32
  }
  func.func @transform_2(%arg0: i32) -> (i32, i32) {
    %c0_i32 = arith.constant 0 : i32
    %c0_i32_0 = arith.constant 0 : i32
    %c0_i32_1 = arith.constant 0 : i32
    return %c0_i32, %c0_i32_0 : i32, i32
  }
  func.func @transform_3(%arg0: i32) -> (i32, i32) {
    %c0_i32 = arith.constant 0 : i32
    %c0_i32_0 = arith.constant 0 : i32
    %c0_i32_1 = arith.constant 0 : i32
    return %c0_i32, %c0_i32_0 : i32, i32
  }
  func.func @transform_4(%arg0: i32) -> (i32, i32) {
    %c0_i32 = arith.constant 0 : i32
    %c0_i32_0 = arith.constant 0 : i32
    return %arg0, %c0_i32 : i32, i32
  }
}

module attributes {stable_mosaic.version = 11 : i64} {
  func.func @mlp_kernel(%arg0: i32, %arg1: memref<16x128xf32, #tpu.memory_space<vmem>>, %arg2: memref<128x256xbf16, #tpu.memory_space<vmem>>, %arg3: memref<256x256xbf16, #tpu.memory_space<vmem>>, %arg4: memref<2x256xf32, #tpu.memory_space<vmem>>, %arg5: memref<16x256xf32, #tpu.memory_space<vmem>>) attributes {dimension_semantics = [#tpu.dimension_semantics<parallel>], iteration_bounds = array<i64: 2>, scalar_prefetch = 0 : i64, scratch_operands = 0 : i64, tpu.core_type = #tpu.core_type<tc>, window_params = [{transform_indices = @transform_0, window_bounds = array<i64: 16, 128>}, {pipeline_mode = #tpu.pipeline_mode<synchronous>, transform_indices = @transform_1, window_bounds = array<i64: 128, 256>}, {pipeline_mode = #tpu.pipeline_mode<synchronous>, transform_indices = @transform_2, window_bounds = array<i64: 256, 256>}, {pipeline_mode = #tpu.pipeline_mode<synchronous>, transform_indices = @transform_3, window_bounds = array<i64: 2, 256>}, {transform_indices = @transform_4, window_bounds = array<i64: 16, 256>}]} {
    %c0 = arith.constant 0 : index
    %c0_0 = arith.constant 0 : index
    %0 = vector.load %arg1[%c0, %c0_0] : memref<16x128xf32, #tpu.memory_space<vmem>>, vector<16x128xf32>
    %1 = arith.truncf %0 : vector<16x128xf32> to vector<16x128xbf16>
    %c0_1 = arith.constant 0 : index
    %c0_2 = arith.constant 0 : index
    %2 = vector.load %arg2[%c0_1, %c0_2] : memref<128x256xbf16, #tpu.memory_space<vmem>>, vector<128x256xbf16>
    %cst = arith.constant dense<0.000000e+00> : vector<16x256xf32>
    %3 = tpu.matmul %1, %2, %cst {dimension_numbers = #tpu.dot_dimension_numbers<[1], [0], [0], [1], [0, 0, 1, 1], [], []>} : vector<16x128xbf16>, vector<128x256xbf16>, vector<16x256xf32> -> vector<16x256xf32>
    %c0_3 = arith.constant 0 : index
    %c0_4 = arith.constant 0 : index
    %4 = vector.load %arg4[%c0_3, %c0_4] : memref<2x256xf32, #tpu.memory_space<vmem>>, vector<1x256xf32>
    %5 = vector.broadcast %4 : vector<1x256xf32> to vector<16x256xf32>
    %6 = arith.addf %3, %5 : vector<16x256xf32>
    %cst_5 = arith.constant 0.000000e+00 : f32
    %7 = vector.broadcast %cst_5 : f32 to vector<16x256xf32>
    %8 = arith.maximumf %6, %7 : vector<16x256xf32>
    %9 = arith.truncf %8 : vector<16x256xf32> to vector<16x256xbf16>
    %c0_6 = arith.constant 0 : index
    %c0_7 = arith.constant 0 : index
    %10 = vector.load %arg3[%c0_6, %c0_7] : memref<256x256xbf16, #tpu.memory_space<vmem>>, vector<256x256xbf16>
    %cst_8 = arith.constant dense<0.000000e+00> : vector<16x256xf32>
    %11 = tpu.matmul %9, %10, %cst_8 {dimension_numbers = #tpu.dot_dimension_numbers<[1], [0], [0], [1], [0, 0, 1, 1], [], []>} : vector<16x256xbf16>, vector<256x256xbf16>, vector<16x256xf32> -> vector<16x256xf32>
    %c1 = arith.constant 1 : index
    %c0_9 = arith.constant 0 : index
    %12 = vector.load %arg4[%c1, %c0_9] : memref<2x256xf32, #tpu.memory_space<vmem>>, vector<1x256xf32>
    %13 = vector.broadcast %12 : vector<1x256xf32> to vector<16x256xf32>
    %14 = arith.addf %11, %13 : vector<16x256xf32>
    %c0_10 = arith.constant 0 : index
    %c0_11 = arith.constant 0 : index
    %15 = vector.load %arg5[%c0_10, %c0_11] : memref<16x256xf32, #tpu.memory_space<vmem>>, vector<16x256xf32>
    tpu.vector_store %arg5[%c0_10, %c0_11], %14 {strides = array<i32>} : memref<16x256xf32, #tpu.memory_space<vmem>>, vector<16x256xf32>,
    return
  }
  func.func @transform_0(%arg0: i32) -> (i32, i32) {
    %c0_i32 = arith.constant 0 : i32
    %c0_i32_0 = arith.constant 0 : i32
    return %arg0, %c0_i32 : i32, i32
  }
  func.func @transform_1(%arg0: i32) -> (i32, i32) {
    %c0_i32 = arith.constant 0 : i32
    %c0_i32_0 = arith.constant 0 : i32
    %c0_i32_1 = arith.constant 0 : i32
    return %c0_i32, %c0_i32_0 : i32, i32
  }
  func.func @transform_2(%arg0: i32) -> (i32, i32) {
    %c0_i32 = arith.constant 0 : i32
    %c0_i32_0 = arith.constant 0 : i32
    %c0_i32_1 = arith.constant 0 : i32
    return %c0_i32, %c0_i32_0 : i32, i32
  }
  func.func @transform_3(%arg0: i32) -> (i32, i32) {
    %c0_i32 = arith.constant 0 : i32
    %c0_i32_0 = arith.constant 0 : i32
    %c0_i32_1 = arith.constant 0 : i32
    return %c0_i32, %c0_i32_0 : i32, i32
  }
  func.func @transform_4(%arg0: i32) -> (i32, i32) {
    %c0_i32 = arith.constant 0 : i32
    %c0_i32_0 = arith.constant 0 : i32
    return %arg0, %c0_i32 : i32, i32
  }
}

</mosaic_0001>

<llo_original>
// kernel: tpu_custom_call.1
$region0: #{tpu_custom_call.1}
  #allocation0 [shape = 'u32[]', space=smem, size = 0x4, offset = 0x4, fixed_abs, tag = 'smem constant byte address 0x4 - core index']
  #allocation1 [shape = 'u32[72,128]{1,0:T(1,128)}', space=vmem, size = 0x9000, scoped, tag = 'internal scratch']
  %s0 = inlined_call_operand.hbm [shape: f32[32,128], index: 0, kind: input, shape index: {}]
  %s1 = inlined_call_operand.hbm [shape: bf16[128,256], index: 1, kind: input, shape index: {}]
  %s2 = inlined_call_operand.hbm [shape: bf16[256,256], index: 2, kind: input, shape index: {}]
  %s3 = inlined_call_operand.hbm [shape: f32[2,256], index: 3, kind: input, shape index: {}]
  %s4 = inlined_call_operand.hbm [shape: f32[32,256], index: 4, kind: output, shape index: {}]
  %s5 = sld [smem:[#allocation0]]
  $region65: #{tpu_custom_call.1} parent=0
    _
  %s7 = ssub.s32 1, %s5
  %s8 = scalar_select 0, %s7, %s5
  $region1: #{tpu_custom_call.1} parent=0
    #allocation2 [shape = 'u8[16384]{0}', space=vmem, size = 0x4000, scoped, tag = 'input window, operand 0']
    #allocation3 [shape = 's32[2]{0}', space=sflag, size = 0x8, scoped, tag = 'scoped memory for tpu_custom_call.1']
    #allocation4 [shape = 's32[2]{0}', space=sflag, size = 0x8, scoped, tag = 'scoped memory for tpu_custom_call.1']
    #allocation5 [shape = 'u8[65536]{0}', space=vmem, size = 0x10000, scoped, tag = 'input window, operand 1, single buffered']
    #allocation6 [shape = 's32[1]{0}', space=sflag, size = 0x4, scoped, tag = 'scoped memory for tpu_custom_call.1']
    #allocation7 [shape = 'u8[131072]{0}', space=vmem, size = 0x20000, scoped, tag = 'input window, operand 2, single buffered']
    #allocation8 [shape = 'u8[2048]{0}', space=vmem, size = 0x800, scoped, tag = 'input window, operand 3, single buffered']
    #allocation9 [shape = 's32[1]{0}', space=sflag, size = 0x4, scoped, tag = 'scoped memory for tpu_custom_call.1']
    #allocation10 [shape = 'u8[32768]{0}', space=vmem, size = 0x8000, scoped, tag = 'output window, operand 0']
    %9 = vsyncpa [#allocation3], 0
    %s10 = scalar_lea.sflag [#allocation3], 1
    %11 = vsyncpa %s10, 0
    %12 = vsyncpa [#allocation6], 0
    %13 = vsyncpa [#allocation9], 0
    %14 = vsyncpa [#allocation4], 0
    %s15 = scalar_lea.sflag [#allocation4], 1
    %16 = vsyncpa %s15, 0
    loop: start=0, step=1, limit=4
    $region2: #{tpu_custom_call.1} parent=1 // loop_pre_header
      _
    $region3: #{tpu_custom_call.1} parent=1 // loop_header
      %s18 = sphi 0, %s22
      %p19 = scmp.ge.s32.totalorder %s18, 4
      %s28 = sphi 0, %s30
      %s31 = sphi 0, %s28
      %s32 = sphi 0, %s31
      %s48 = sphi 0, %s32
      %s52 = sphi 0, %s52
      %s54 = sphi 0, %s52
      %s55 = sphi 0, %s54
      %s69 = sphi 0, %s55
      %s73 = sphi 0, %s73
      %s75 = sphi 0, %s73
      %s76 = sphi 0, %s75
      %s90 = sphi 0, %s76
      %s94 = sphi 0, %s94
      %s96 = sphi 0, %s94
      %s97 = sphi 0, %s96
      %s111 = sphi 0, %s97
      %s117 = sphi 0, %s119
      %s120 = sphi 0, %s117
      %s121 = sphi 0, %s120
      %s137 = sphi 0, %s121
    $region4: #{tpu_custom_call.1} parent=1 // loop_header_branch
      %21 = sbr.rel (%p19) target = $region8
    $region5: #{tpu_custom_call.1} parent=1 // loop_body
      %s23 = ssub.s32 %s18, 1
      %s24 = ssub.s32 %s18, 2
      %s25 = sadd.s32 %s18, 1
      %s26 = ssub.s32 %s18, %s25
      %p27 = scmp.eq.s32.totalorder %s26, 0
      %s29 = sadd.s32 %s28, 1
      %s30 = scalar_select %p27, %s28, %s29
      %p33 = pneg %p27
      %p34 = scmp.eq.s32.totalorder %s18, 1
      %p35 = por %p33, %p34
      %p36 = scmp.ne.s32.totalorder %s28, %s31
      %p37 = scmp.eq.s32.totalorder %s18, 0
      %p38 = por %p36, %p37
      %p39 = scmp.ne.s32.totalorder %s28, %s31
      %p40 = scmp.eq.s32.totalorder %s23, 1
      %p41 = por %p39, %p40
      %p42 = scmp.ne.s32.totalorder %s31, %s32
      %p43 = scmp.eq.s32.totalorder %s23, 0
      %p44 = por %p42, %p43
      %p45 = scmp.ne.s32.totalorder %s31, %s32
      %p46 = scmp.eq.s32.totalorder %s24, 1
      %p47 = por %p45, %p46
      %p49 = scmp.ne.s32.totalorder %s32, %s48
      %p50 = scmp.eq.s32.totalorder %s24, 0
      %p51 = por %p49, %p50
      %s53 = sadd.s32 %s52, 1
      %p56 = scmp.eq.s32.totalorder %s18, 1
      %p57 = scmp.ne.s32.totalorder %s52, %s54
      %p58 = scmp.eq.s32.totalorder %s18, 0
      %p59 = por %p57, %p58
      %p60 = scmp.ne.s32.totalorder %s52, %s54
      %p61 = scmp.eq.s32.totalorder %s23, 1
      %p62 = por %p60, %p61
      %p63 = scmp.ne.s32.totalorder %s54, %s55
      %p64 = scmp.eq.s32.totalorder %s23, 0
      %p65 = por %p63, %p64
      %p66 = scmp.ne.s32.totalorder %s54, %s55
      %p67 = scmp.eq.s32.totalorder %s24, 1
      %p68 = por %p66, %p67
      %p70 = scmp.ne.s32.totalorder %s55, %s69
      %p71 = scmp.eq.s32.totalorder %s24, 0
      %p72 = por %p70, %p71
      %s74 = sadd.s32 %s73, 1
      %p77 = scmp.eq.s32.totalorder %s18, 1
      %p78 = scmp.ne.s32.totalorder %s73, %s75
      %p79 = scmp.eq.s32.totalorder %s18, 0
      %p80 = por %p78, %p79
      %p81 = scmp.ne.s32.totalorder %s73, %s75
      %p82 = scmp.eq.s32.totalorder %s23, 1
      %p83 = por %p81, %p82
      %p84 = scmp.ne.s32.totalorder %s75, %s76
      %p85 = scmp.eq.s32.totalorder %s23, 0
      %p86 = por %p84, %p85
      %p87 = scmp.ne.s32.totalorder %s75, %s76
      %p88 = scmp.eq.s32.totalorder %s24, 1
      %p89 = por %p87, %p88
      %p91 = scmp.ne.s32.totalorder %s76, %s90
      %p92 = scmp.eq.s32.totalorder %s24, 0
      %p93 = por %p91, %p92
      %s95 = sadd.s32 %s94, 1
      %p98 = scmp.eq.s32.totalorder %s18, 1
      %p99 = scmp.ne.s32.totalorder %s94, %s96
      %p100 = scmp.eq.s32.totalorder %s18, 0
      %p101 = por %p99, %p100
      %p102 = scmp.ne.s32.totalorder %s94, %s96
      %p103 = scmp.eq.s32.totalorder %s23, 1
      %p104 = por %p102, %p103
      %p105 = scmp.ne.s32.totalorder %s96, %s97
      %p106 = scmp.eq.s32.totalorder %s23, 0
      %p107 = por %p105, %p106
      %p108 = scmp.ne.s32.totalorder %s96, %s97
      %p109 = scmp.eq.s32.totalorder %s24, 1
      %p110 = por %p108, %p109
      %p112 = scmp.ne.s32.totalorder %s97, %s111
      %p113 = scmp.eq.s32.totalorder %s24, 0
      %p114 = por %p112, %p113
      %s115 = ssub.s32 %s18, %s25
      %p116 = scmp.eq.s32.totalorder %s115, 0
      %s118 = sadd.s32 %s117, 1
      %s119 = scalar_select %p116, %s117, %s118
      %p122 = pneg %p116
      %p123 = scmp.eq.s32.totalorder %s18, 1
      %p124 = por %p122, %p123
      %p125 = scmp.ne.s32.totalorder %s117, %s120
      %p126 = scmp.eq.s32.totalorder %s18, 0
      %p127 = por %p125, %p126
      %p128 = scmp.ne.s32.totalorder %s117, %s120
      %p129 = scmp.eq.s32.totalorder %s23, 1
      %p130 = por %p128, %p129
      %p131 = scmp.ne.s32.totalorder %s120, %s121
      %p132 = scmp.eq.s32.totalorder %s23, 0
      %p133 = por %p131, %p132
      %p134 = scmp.ne.s32.totalorder %s120, %s121
      %p135 = scmp.eq.s32.totalorder %s24, 1
      %p136 = por %p134, %p135
      %p138 = scmp.ne.s32.totalorder %s121, %s137
      %p139 = scmp.eq.s32.totalorder %s24, 0
      %p140 = por %p138, %p139
      %p141 = scmp.le.s32.totalorder 1, %s18
      %p142 = scmp.lt.s32.totalorder %s18, 3
      %p143 = pnand %p141, %p142
      %p144 = pneg %p143
      // Predicated region
      $region9: #{tpu_custom_call.1} parent=5 // pred_check
        _
      $region10: #{tpu_custom_call.1} parent=5 // pred_check_branch
        %146 = sbr.rel (%p143) target = $region12
      $region11: #{tpu_custom_call.1} parent=5 // pred_region
        %s147 = ssub.s32 %s18, 1
        // Predicated region
        $region13: #{tpu_custom_call.1} parent=11 // pred_check
          %p148 = pneg %p65
        $region14: #{tpu_custom_call.1} parent=11 // pred_check_branch
          %150 = sbr.rel (%p148) target = $region16
        $region15: #{tpu_custom_call.1} parent=11 // pred_region
          %152 = vsyncadd [#allocation6], 0
          %s153 = sshll.u32 %s1, 4
          %s154 = int_to_ptr.hbm [resolvable:$true] %s153
          %s155 = sshll.u32 [#allocation5], 4
          %s156 = int_to_ptr.vmem [resolvable:$true] %s155
          %161 = dma.hbm_to_vmem [thread:$0]  %s154, 2048, %s156, [#allocation6], 128, 128, 8
        $region16: #{tpu_custom_call.1} parent=11 // pred_fallthru
          _
        // Predicated region
        $region17: #{tpu_custom_call.1} parent=11 // pred_check
          %p162 = pneg %p86
        $region18: #{tpu_custom_call.1} parent=11 // pred_check_branch
          %164 = sbr.rel (%p162) target = $region20
        $region19: #{tpu_custom_call.1} parent=11 // pred_region
          %166 = vsyncadd [#allocation6], 0
          %s167 = sshll.u32 %s2, 4
          %s168 = int_to_ptr.hbm [resolvable:$true] %s167
          %s169 = sshll.u32 [#allocation7], 4
          %s170 = int_to_ptr.vmem [resolvable:$true] %s169
          %175 = dma.hbm_to_vmem [thread:$0]  %s168, 4096, %s170, [#allocation6], 128, 128, 8
        $region20: #{tpu_custom_call.1} parent=11 // pred_fallthru
          _
        // Predicated region
        $region21: #{tpu_custom_call.1} parent=11 // pred_check
          %p176 = pneg %p107
        $region22: #{tpu_custom_call.1} parent=11 // pred_check_branch
          %178 = sbr.rel (%p176) target = $region24
        $region23: #{tpu_custom_call.1} parent=11 // pred_region
          %180 = vsyncadd [#allocation9], 0
          %s182 = sshll.u32 %s3, 4
          %s183 = int_to_ptr.hbm [resolvable:$true] %s182
          %s184 = sshll.u32 [#allocation8], 4
          %s185 = int_to_ptr.vmem [resolvable:$true] %s184
          %187 = dma.hbm_to_vmem [thread:$0]  %s183, 64, %s185, [#allocation9]
        $region24: #{tpu_custom_call.1} parent=11 // pred_fallthru
          _
      $region12: #{tpu_custom_call.1} parent=5 // pred_fallthru
        _
      %p188 = scmp.lt.s32.totalorder %s18, 2
      // Predicated region
      $region25: #{tpu_custom_call.1} parent=5 // pred_check
        %p189 = pneg %p188
      $region26: #{tpu_custom_call.1} parent=5 // pred_check_branch
        %191 = sbr.rel (%p189) target = $region28
      $region27: #{tpu_custom_call.1} parent=5 // pred_region
        // Predicated region
        $region29: #{tpu_custom_call.1} parent=27 // pred_check
          %p192 = pneg %p38
        $region30: #{tpu_custom_call.1} parent=27 // pred_check_branch
          %194 = sbr.rel (%p192) target = $region32
        $region31: #{tpu_custom_call.1} parent=27 // pred_region
          %s195 = sand.u32 %s28, 1
          %s196 = scalar_lea.sflag [#allocation3], %s195
          %s197 = sand.u32 %s28, 1
          %s198 = smul.addr %s197, 16
          %s199 = scalar_lea.vmem [#allocation2], %s198
          %s200 = smul.u32 2, %s18
          %202 = vsyncadd %s196, 0
          %s203 = smul.addr %s200, 8
          %s204 = scalar_lea.hbm %s0, %s203
          %s205 = sshll.u32 %s204, 4
          %s206 = int_to_ptr.hbm [resolvable:$true] %s205
          %s207 = sshll.u32 %s199, 4
          %s208 = int_to_ptr.vmem [resolvable:$true] %s207
          %213 = dma.hbm_to_vmem [thread:$0]  %s206, 256, %s208, %s196, 128, 128, 8
        $region32: #{tpu_custom_call.1} parent=27 // pred_fallthru
          _
      $region28: #{tpu_custom_call.1} parent=5 // pred_fallthru
        _
      %p214 = scmp.le.s32.totalorder 1, %s18
      %p215 = scmp.lt.s32.totalorder %s18, 3
      %p216 = pnand %p214, %p215
      %p217 = pneg %p216
      // Predicated region
      $region33: #{tpu_custom_call.1} parent=5 // pred_check
        _
      $region34: #{tpu_custom_call.1} parent=5 // pred_check_branch
        %219 = sbr.rel (%p216) target = $region36
      $region35: #{tpu_custom_call.1} parent=5 // pred_region
        %s220 = ssub.s32 %s18, 1
        %s221 = sand.u32 %s31, 1
        %s222 = scalar_lea.sflag [#allocation3], %s221
        %s223 = sand.u32 %s31, 1
        %s224 = smul.addr %s223, 16
        %s225 = scalar_lea.vmem [#allocation2], %s224
        // Predicated region
        $region37: #{tpu_custom_call.1} parent=35 // pred_check
          %p226 = pneg %p44
        $region38: #{tpu_custom_call.1} parent=35 // pred_check_branch
          %228 = sbr.rel (%p226) target = $region40
        $region39: #{tpu_custom_call.1} parent=35 // pred_region
          %230 = dma.done %s222, 256
        $region40: #{tpu_custom_call.1} parent=35 // pred_fallthru
          _
        // Predicated region
        $region41: #{tpu_custom_call.1} parent=35 // pred_check
          %p231 = pneg %p65
        $region42: #{tpu_custom_call.1} parent=35 // pred_check_branch
          %233 = sbr.rel (%p231) target = $region44
        $region43: #{tpu_custom_call.1} parent=35 // pred_region
          %235 = dma.done [#allocation6], 2048
        $region44: #{tpu_custom_call.1} parent=35 // pred_fallthru
          _
        // Predicated region
        $region45: #{tpu_custom_call.1} parent=35 // pred_check
          %p236 = pneg %p86
        $region46: #{tpu_custom_call.1} parent=35 // pred_check_branch
          %238 = sbr.rel (%p236) target = $region48
        $region47: #{tpu_custom_call.1} parent=35 // pred_region
          %240 = dma.done [#allocation6], 4096
        $region48: #{tpu_custom_call.1} parent=35 // pred_fallthru
          _
        // Predicated region
        $region49: #{tpu_custom_call.1} parent=35 // pred_check
          %p241 = pneg %p107
        $region50: #{tpu_custom_call.1} parent=35 // pred_check_branch
          %243 = sbr.rel (%p241) target = $region52
        $region51: #{tpu_custom_call.1} parent=35 // pred_region
          %245 = dma.done [#allocation9], 64
        $region52: #{tpu_custom_call.1} parent=35 // pred_fallthru
          _
        %s246 = sand.u32 %s31, 1
        %s247 = scalar_lea.sflag [#allocation3], %s246
        %s248 = sand.u32 %s31, 1
        %s249 = smul.addr %s248, 16
        %s250 = scalar_lea.vmem [#allocation2], %s249
        %p251 = pneg %p44
        %p252 = pneg %p41
        %p253 = pneg %p65
        %p254 = pneg %p62
        %p255 = pneg %p86
        %p256 = pneg %p83
        %p257 = pneg %p107
        %p258 = pneg %p104
        %p259 = pneg %p133
        %p260 = pneg %p130
        %s261 = sand.u32 %s120, 1
        %s262 = scalar_lea.sflag [#allocation4], %s261
        %s263 = sand.u32 %s120, 1
        %s264 = smul.addr %s263, 32
        %s265 = scalar_lea.vmem [#allocation10], %s264
        %s266 = smul.u32 2, %s23
        %s267 = smul.u32 2, %s23
        %v268 = vld [vmem:[%s225] sm:$0xff]
        %v269 = vld [vmem:[%s225 + $0x8] sm:$0xff]
        %v270 = vpack.c.bf16 %v269, %v268
        %v271 = vld [vmem:[#allocation5] sm:$0xff]
        %v272 = vld [vmem:[#allocation5 + $0x8] sm:$0xff]
        %v273 = vld [vmem:[#allocation5 + $0x10] sm:$0xff]
        %v274 = vld [vmem:[#allocation5 + $0x18] sm:$0xff]
        %v275 = vld [vmem:[#allocation5 + $0x20] sm:$0xff]
        %v276 = vld [vmem:[#allocation5 + $0x28] sm:$0xff]
        %v277 = vld [vmem:[#allocation5 + $0x30] sm:$0xff]
        %v278 = vld [vmem:[#allocation5 + $0x38] sm:$0xff]
        %v279 = vld [vmem:[#allocation5 + $0x40] sm:$0xff]
        %v280 = vld [vmem:[#allocation5 + $0x48] sm:$0xff]
        %v281 = vld [vmem:[#allocation5 + $0x50] sm:$0xff]
        %v282 = vld [vmem:[#allocation5 + $0x58] sm:$0xff]
        %v283 = vld [vmem:[#allocation5 + $0x60] sm:$0xff]
        %v284 = vld [vmem:[#allocation5 + $0x68] sm:$0xff]
        %v285 = vld [vmem:[#allocation5 + $0x70] sm:$0xff]
        %v286 = vld [vmem:[#allocation5 + $0x78] sm:$0xff]
        %v287 = vld [vmem:[#allocation8] ss:$2 sm:$0x3]
        %v289 = vperm.slane %v287, 0
        %v290 = vperm.slane %v287, 1
        %v309 = vunpack.c.l.b16 %v271
        %v310 = vunpack.c.h.b16 %v271
        %v311 = vunpack.c.l.b16 %v272
        %v312 = vunpack.c.h.b16 %v272
        %v313 = vunpack.c.l.b16 %v273
        %v314 = vunpack.c.h.b16 %v273
        %v315 = vunpack.c.l.b16 %v274
        %v316 = vunpack.c.h.b16 %v274
        %v317 = vunpack.c.l.b16 %v275
        %v318 = vunpack.c.h.b16 %v275
        %v319 = vunpack.c.l.b16 %v276
        %v320 = vunpack.c.h.b16 %v276
        %v321 = vunpack.c.l.b16 %v277
        %v322 = vunpack.c.h.b16 %v277
        %v323 = vunpack.c.l.b16 %v278
        %v324 = vunpack.c.h.b16 %v278
        %v325 = vunpack.c.l.b16 %v279
        %v326 = vunpack.c.h.b16 %v279
        %v327 = vunpack.c.l.b16 %v280
        %v328 = vunpack.c.h.b16 %v280
        %v329 = vunpack.c.l.b16 %v281
        %v330 = vunpack.c.h.b16 %v281
        %v331 = vunpack.c.l.b16 %v282
        %v332 = vunpack.c.h.b16 %v282
        %v333 = vunpack.c.l.b16 %v283
        %v334 = vunpack.c.h.b16 %v283
        %v335 = vunpack.c.l.b16 %v284
        %v336 = vunpack.c.h.b16 %v284
        %v337 = vunpack.c.l.b16 %v285
        %v338 = vunpack.c.h.b16 %v285
        %v339 = vunpack.c.l.b16 %v286
        %v340 = vunpack.c.h.b16 %v286
        %v341 = vpack.c.b16 %v311, %v309
        %v342 = vpack.c.b16 %v312, %v310
        %v343 = vpack.c.b16 %v315, %v313
        %v344 = vpack.c.b16 %v316, %v314
        %v345 = vpack.c.b16 %v319, %v317
        %v346 = vpack.c.b16 %v320, %v318
        %v347 = vpack.c.b16 %v323, %v321
        %v348 = vpack.c.b16 %v324, %v322
        %v349 = vpack.c.b16 %v327, %v325
        %v350 = vpack.c.b16 %v328, %v326
        %v351 = vpack.c.b16 %v331, %v329
        %v352 = vpack.c.b16 %v332, %v330
        %v353 = vpack.c.b16 %v335, %v333
        %v354 = vpack.c.b16 %v336, %v334
        %v355 = vpack.c.b16 %v339, %v337
        %v356 = vpack.c.b16 %v340, %v338
        %373 = vmatpush.bf16.msra.mxu0 %v355
        %374 = vmatpush.bf16.msra.mxu0 %v353
        %375 = vmatpush.bf16.msra.mxu0 %v351
        %376 = vmatpush.bf16.msra.mxu0 %v349
        %377 = vmatpush.bf16.msra.mxu0 %v347
        %378 = vmatpush.bf16.msra.mxu0 %v345
        %379 = vmatpush.bf16.msra.mxu0 %v343
        %380 = vmatpush.bf16.msra.mxu0 %v341
        %381 = vmatmul.bf16.gmra.mxu0 %v270
        %v382 = vpop.f32.mrf.mxu0
        %v383 = vadd.f32 %v289, %v382
        %v384 = vpop.f32.mrf.mxu0
        %v385 = vadd.f32 %v289, %v384
        %386 = vdwg.mxu0
        %387 = vmatpush.bf16.msra.mxu0 %v356
        %388 = vmatpush.bf16.msra.mxu0 %v354
        %389 = vmatpush.bf16.msra.mxu0 %v352
        %390 = vmatpush.bf16.msra.mxu0 %v350
        %391 = vmatpush.bf16.msra.mxu0 %v348
        %392 = vmatpush.bf16.msra.mxu0 %v346
        %393 = vmatpush.bf16.msra.mxu0 %v344
        %394 = vmatpush.bf16.msra.mxu0 %v342
        %395 = vmatmul.bf16.gmra.mxu0 %v270
        %v396 = vpop.f32.mrf.mxu0
        %v397 = vadd.f32 %v290, %v396
        %v398 = vpop.f32.mrf.mxu0
        %v399 = vadd.f32 %v290, %v398
        %400 = vdwg.mxu0
        %v401 = vmax.f32 %v383, 0.0
        %v402 = vmax.f32 %v397, 0.0
        %v403 = vmax.f32 %v385, 0.0
        %v404 = vmax.f32 %v399, 0.0
        %v405 = vpack.c.bf16 %v403, %v401
        %v406 = vpack.c.bf16 %v404, %v402
        %v407 = vld [vmem:[#allocation7] sm:$0xff]
        %v408 = vld [vmem:[#allocation7 + $0x8] sm:$0xff]
        %v409 = vld [vmem:[#allocation7 + $0x10] sm:$0xff]
        %v410 = vld [vmem:[#allocation7 + $0x18] sm:$0xff]
        %v411 = vld [vmem:[#allocation7 + $0x20] sm:$0xff]
        %v412 = vld [vmem:[#allocation7 + $0x28] sm:$0xff]
        %v413 = vld [vmem:[#allocation7 + $0x30] sm:$0xff]
        %v414 = vld [vmem:[#allocation7 + $0x38] sm:$0xff]
        %v415 = vld [vmem:[#allocation7 + $0x40] sm:$0xff]
        %v416 = vld [vmem:[#allocation7 + $0x48] sm:$0xff]
        %v417 = vld [vmem:[#allocation7 + $0x50] sm:$0xff]
        %v418 = vld [vmem:[#allocation7 + $0x58] sm:$0xff]
        %v419 = vld [vmem:[#allocation7 + $0x60] sm:$0xff]
        %v420 = vld [vmem:[#allocation7 + $0x68] sm:$0xff]
        %v421 = vld [vmem:[#allocation7 + $0x70] sm:$0xff]
        %v422 = vld [vmem:[#allocation7 + $0x78] sm:$0xff]
        %v423 = vld [vmem:[#allocation7 + $0x80] sm:$0xff]
        %v424 = vld [vmem:[#allocation7 + $0x88] sm:$0xff]
        %v425 = vld [vmem:[#allocation7 + $0x90] sm:$0xff]
        %v426 = vld [vmem:[#allocation7 + $0x98] sm:$0xff]
        %v427 = vld [vmem:[#allocation7 + $0xa0] sm:$0xff]
        %v428 = vld [vmem:[#allocation7 + $0xa8] sm:$0xff]
        %v429 = vld [vmem:[#allocation7 + $0xb0] sm:$0xff]
        %v430 = vld [vmem:[#allocation7 + $0xb8] sm:$0xff]
        %v431 = vld [vmem:[#allocation7 + $0xc0] sm:$0xff]
        %v432 = vld [vmem:[#allocation7 + $0xc8] sm:$0xff]
        %v433 = vld [vmem:[#allocation7 + $0xd0] sm:$0xff]
        %v434 = vld [vmem:[#allocation7 + $0xd8] sm:$0xff]
        %v435 = vld [vmem:[#allocation7 + $0xe0] sm:$0xff]
        %v436 = vld [vmem:[#allocation7 + $0xe8] sm:$0xff]
        %v437 = vld [vmem:[#allocation7 + $0xf0] sm:$0xff]
        %v438 = vld [vmem:[#allocation7 + $0xf8] sm:$0xff]
        %s439 = scalar_lea.vmem [#allocation8], 1
        %v440 = vld [vmem:[%s439] ss:$2 sm:$0x3]
        %v442 = vperm.slane %v440, 0
        %v443 = vperm.slane %v440, 1
        %v478 = vunpack.c.l.b16 %v407
        %v479 = vunpack.c.h.b16 %v407
        %v480 = vunpack.c.l.b16 %v408
        %v481 = vunpack.c.h.b16 %v408
        %v482 = vunpack.c.l.b16 %v409
        %v483 = vunpack.c.h.b16 %v409
        %v484 = vunpack.c.l.b16 %v410
        %v485 = vunpack.c.h.b16 %v410
        %v486 = vunpack.c.l.b16 %v411
        %v487 = vunpack.c.h.b16 %v411
        %v488 = vunpack.c.l.b16 %v412
        %v489 = vunpack.c.h.b16 %v412
        %v490 = vunpack.c.l.b16 %v413
        %v491 = vunpack.c.h.b16 %v413
        %v492 = vunpack.c.l.b16 %v414
        %v493 = vunpack.c.h.b16 %v414
        %v494 = vunpack.c.l.b16 %v415
        %v495 = vunpack.c.h.b16 %v415
        %v496 = vunpack.c.l.b16 %v416
        %v497 = vunpack.c.h.b16 %v416
        %v498 = vunpack.c.l.b16 %v417
        %v499 = vunpack.c.h.b16 %v417
        %v500 = vunpack.c.l.b16 %v418
        %v501 = vunpack.c.h.b16 %v418
        %v502 = vunpack.c.l.b16 %v419
        %v503 = vunpack.c.h.b16 %v419
        %v504 = vunpack.c.l.b16 %v420
        %v505 = vunpack.c.h.b16 %v420
        %v506 = vunpack.c.l.b16 %v421
        %v507 = vunpack.c.h.b16 %v421
        %v508 = vunpack.c.l.b16 %v422
        %v509 = vunpack.c.h.b16 %v422
        %v510 = vunpack.c.l.b16 %v423
        %v511 = vunpack.c.h.b16 %v423
        %v512 = vunpack.c.l.b16 %v424
        %v513 = vunpack.c.h.b16 %v424
        %v514 = vunpack.c.l.b16 %v425
        %v515 = vunpack.c.h.b16 %v425
        %v516 = vunpack.c.l.b16 %v426
        %v517 = vunpack.c.h.b16 %v426
        %v518 = vunpack.c.l.b16 %v427
        %v519 = vunpack.c.h.b16 %v427
        %v520 = vunpack.c.l.b16 %v428
        %v521 = vunpack.c.h.b16 %v428
        %v522 = vunpack.c.l.b16 %v429
        %v523 = vunpack.c.h.b16 %v429
        %v524 = vunpack.c.l.b16 %v430
        %v525 = vunpack.c.h.b16 %v430
        %v526 = vunpack.c.l.b16 %v431
        %v527 = vunpack.c.h.b16 %v431
        %v528 = vunpack.c.l.b16 %v432
        %v529 = vunpack.c.h.b16 %v432
        %v530 = vunpack.c.l.b16 %v433
        %v531 = vunpack.c.h.b16 %v433
        %v532 = vunpack.c.l.b16 %v434
        %v533 = vunpack.c.h.b16 %v434
        %v534 = vunpack.c.l.b16 %v435
        %v535 = vunpack.c.h.b16 %v435
        %v536 = vunpack.c.l.b16 %v436
        %v537 = vunpack.c.h.b16 %v436
        %v538 = vunpack.c.l.b16 %v437
        %v539 = vunpack.c.h.b16 %v437
        %v540 = vunpack.c.l.b16 %v438
        %v541 = vunpack.c.h.b16 %v438
        %v542 = vpack.c.b16 %v480, %v478
        %v543 = vpack.c.b16 %v481, %v479
        %v544 = vpack.c.b16 %v484, %v482
        %v545 = vpack.c.b16 %v485, %v483
        %v546 = vpack.c.b16 %v488, %v486
        %v547 = vpack.c.b16 %v489, %v487
        %v548 = vpack.c.b16 %v492, %v490
        %v549 = vpack.c.b16 %v493, %v491
        %v550 = vpack.c.b16 %v496, %v494
        %v551 = vpack.c.b16 %v497, %v495
        %v552 = vpack.c.b16 %v500, %v498
        %v553 = vpack.c.b16 %v501, %v499
        %v554 = vpack.c.b16 %v504, %v502
        %v555 = vpack.c.b16 %v505, %v503
        %v556 = vpack.c.b16 %v508, %v506
        %v557 = vpack.c.b16 %v509, %v507
        %v558 = vpack.c.b16 %v512, %v510
        %v559 = vpack.c.b16 %v513, %v511
        %v560 = vpack.c.b16 %v516, %v514
        %v561 = vpack.c.b16 %v517, %v515
        %v562 = vpack.c.b16 %v520, %v518
        %v563 = vpack.c.b16 %v521, %v519
        %v564 = vpack.c.b16 %v524, %v522
        %v565 = vpack.c.b16 %v525, %v523
        %v566 = vpack.c.b16 %v528, %v526
        %v567 = vpack.c.b16 %v529, %v527
        %v568 = vpack.c.b16 %v532, %v530
        %v569 = vpack.c.b16 %v533, %v531
        %v570 = vpack.c.b16 %v536, %v534
        %v571 = vpack.c.b16 %v537, %v535
        %v572 = vpack.c.b16 %v540, %v538
        %v573 = vpack.c.b16 %v541, %v539
        %606 = vmatpush.bf16.msra.mxu0 %v556
        %607 = vmatpush.bf16.msra.mxu0 %v554
        %608 = vmatpush.bf16.msra.mxu0 %v552
        %609 = vmatpush.bf16.msra.mxu0 %v550
        %610 = vmatpush.bf16.msra.mxu0 %v548
        %611 = vmatpush.bf16.msra.mxu0 %v546
        %612 = vmatpush.bf16.msra.mxu0 %v544
        %613 = vmatpush.bf16.msra.mxu0 %v542
        %614 = vmatmul.bf16.gmra.mxu0 %v405
        %v615 = vpop.f32.mrf.mxu0
        %v616 = vadd.f32 %v442, %v615
        %v617 = vpop.f32.mrf.mxu0
        %v618 = vadd.f32 %v442, %v617
        %619 = vdwg.mxu0
        %620 = vmatpush.bf16.msra.mxu0 %v572
        %621 = vmatpush.bf16.msra.mxu0 %v570
        %622 = vmatpush.bf16.msra.mxu0 %v568
        %623 = vmatpush.bf16.msra.mxu0 %v566
        %624 = vmatpush.bf16.msra.mxu0 %v564
        %625 = vmatpush.bf16.msra.mxu0 %v562
        %626 = vmatpush.bf16.msra.mxu0 %v560
        %627 = vmatpush.bf16.msra.mxu0 %v558
        %628 = vmatmul.bf16.gmra.mxu0 %v406
        %v629 = vpop.f32.mrf.mxu0
        %v630 = vadd.f32 %v616, %v629
        %v631 = vpop.f32.mrf.mxu0
        %v632 = vadd.f32 %v618, %v631
        %633 = vdwg.mxu0
        %634 = vmatpush.bf16.msra.mxu0 %v557
        %635 = vmatpush.bf16.msra.mxu0 %v555
        %636 = vmatpush.bf16.msra.mxu0 %v553
        %637 = vmatpush.bf16.msra.mxu0 %v551
        %638 = vmatpush.bf16.msra.mxu0 %v549
        %639 = vmatpush.bf16.msra.mxu0 %v547
        %640 = vmatpush.bf16.msra.mxu0 %v545
        %641 = vmatpush.bf16.msra.mxu0 %v543
        %642 = vmatmul.bf16.gmra.mxu0 %v405
        %v643 = vpop.f32.mrf.mxu0
        %v644 = vadd.f32 %v443, %v643
        %v645 = vpop.f32.mrf.mxu0
        %v646 = vadd.f32 %v443, %v645
        %647 = vdwg.mxu0
        %648 = vmatpush.bf16.msra.mxu0 %v573
        %649 = vmatpush.bf16.msra.mxu0 %v571
        %650 = vmatpush.bf16.msra.mxu0 %v569
        %651 = vmatpush.bf16.msra.mxu0 %v567
        %652 = vmatpush.bf16.msra.mxu0 %v565
        %653 = vmatpush.bf16.msra.mxu0 %v563
        %654 = vmatpush.bf16.msra.mxu0 %v561
        %655 = vmatpush.bf16.msra.mxu0 %v559
        %656 = vmatmul.bf16.gmra.mxu0 %v406
        %v657 = vpop.f32.mrf.mxu0
        %v658 = vadd.f32 %v644, %v657
        %v659 = vpop.f32.mrf.mxu0
        %v660 = vadd.f32 %v646, %v659
        %661 = vdwg.mxu0
        %662 = vst [vmem:[%s265] sm:$0xff] %v630
        %663 = vst [vmem:[%s265 + $0x8] sm:$0xff] %v658
        %664 = vst [vmem:[%s265 + $0x10] sm:$0xff] %v632
        %665 = vst [vmem:[%s265 + $0x18] sm:$0xff] %v660
        %s666 = sand.u32 %s120, 1
        %s667 = scalar_lea.sflag [#allocation4], %s666
        %s668 = sand.u32 %s120, 1
        %s669 = smul.addr %s668, 32
        %s670 = scalar_lea.vmem [#allocation10], %s669
        // Predicated region
        $region53: #{tpu_custom_call.1} parent=35 // pred_check
          %p671 = pneg %p130
        $region54: #{tpu_custom_call.1} parent=35 // pred_check_branch
          %673 = sbr.rel (%p671) target = $region56
        $region55: #{tpu_custom_call.1} parent=35 // pred_region
          %s674 = smul.u32 2, %s23
          %676 = vsyncadd %s667, 0
          %s677 = smul.addr %s674, 2
          %s678 = smul.addr %s677, 8
          %s679 = scalar_lea.hbm %s4, %s678
          %s680 = sshll.u32 %s670, 4
          %s681 = int_to_ptr.vmem [resolvable:$true] %s680
          %s682 = sshll.u32 %s679, 4
          %s683 = int_to_ptr.hbm [resolvable:$true] %s682
          %688 = dma.vmem_to_hbm [thread:$0]  %s681, 512, %s683, %s667, 256, 256, 16
        $region56: #{tpu_custom_call.1} parent=35 // pred_fallthru
          _
      $region36: #{tpu_custom_call.1} parent=5 // pred_fallthru
        _
      %p689 = scmp.le.s32.totalorder 2, %s18
      // Predicated region
      $region57: #{tpu_custom_call.1} parent=5 // pred_check
        %p690 = pneg %p689
      $region58: #{tpu_custom_call.1} parent=5 // pred_check_branch
        %692 = sbr.rel (%p690) target = $region60
      $region59: #{tpu_custom_call.1} parent=5 // pred_region
        %s693 = ssub.s32 %s18, 2
        // Predicated region
        $region61: #{tpu_custom_call.1} parent=59 // pred_check
          %p694 = pneg %p136
        $region62: #{tpu_custom_call.1} parent=59 // pred_check_branch
          %696 = sbr.rel (%p694) target = $region64
        $region63: #{tpu_custom_call.1} parent=59 // pred_region
          %s697 = sand.u32 %s121, 1
          %s698 = scalar_lea.sflag [#allocation4], %s697
          %s699 = sand.u32 %s121, 1
          %s700 = smul.addr %s699, 32
          %s701 = scalar_lea.vmem [#allocation10], %s700
          %703 = dma.done %s698, 512
        $region64: #{tpu_custom_call.1} parent=59 // pred_fallthru
          _
      $region60: #{tpu_custom_call.1} parent=5 // pred_fallthru
        _
    $region6: #{tpu_custom_call.1} parent=1 // loop_footer
      %s22 = sadd.s32 1, %s18
    $region7: #{tpu_custom_call.1} parent=1 // loop_footer_branch
      %17 = sbr.rel target = $region3
    $region8: #{tpu_custom_call.1} parent=1 // loop_exit
      _
    %704 = vsyncpa [#allocation3], 1
    %s705 = scalar_lea.sflag [#allocation3], 1
    %706 = vsyncpa %s705, 1
    %707 = vsyncpa [#allocation6], 1
    %708 = vsyncpa [#allocation9], 1
    %709 = vsyncpa [#allocation4], 1
    %s710 = scalar_lea.sflag [#allocation4], 1
    %711 = vsyncpa %s710, 1

// kernel: tpu_custom_call.1
$region0: #{tpu_custom_call.1}
  #allocation0 [shape = 'u32[]', space=smem, size = 0x4, offset = 0x4, fixed_abs, tag = 'smem constant byte address 0x4 - core index']
  #allocation1 [shape = 'u32[72,128]{1,0:T(1,128)}', space=vmem, size = 0x9000, scoped, tag = 'internal scratch']
  %s0 = inlined_call_operand.hbm [shape: f32[32,128], index: 0, kind: input, shape index: {}]
  %s1 = inlined_call_operand.hbm [shape: bf16[128,256], index: 1, kind: input, shape index: {}]
  %s2 = inlined_call_operand.hbm [shape: bf16[256,256], index: 2, kind: input, shape index: {}]
  %s3 = inlined_call_operand.hbm [shape: f32[2,256], index: 3, kind: input, shape index: {}]
  %s4 = inlined_call_operand.hbm [shape: f32[32,256], index: 4, kind: output, shape index: {}]
  %s5 = sld [smem:[#allocation0]]
  $region65: #{tpu_custom_call.1} parent=0
    _
  %s7 = ssub.s32 1, %s5
  %s8 = scalar_select 0, %s7, %s5
  $region1: #{tpu_custom_call.1} parent=0
    #allocation2 [shape = 'u8[16384]{0}', space=vmem, size = 0x4000, scoped, tag = 'input window, operand 0']
    #allocation3 [shape = 's32[2]{0}', space=sflag, size = 0x8, scoped, tag = 'scoped memory for tpu_custom_call.1']
    #allocation4 [shape = 's32[2]{0}', space=sflag, size = 0x8, scoped, tag = 'scoped memory for tpu_custom_call.1']
    #allocation5 [shape = 'u8[65536]{0}', space=vmem, size = 0x10000, scoped, tag = 'input window, operand 1, single buffered']
    #allocation6 [shape = 's32[1]{0}', space=sflag, size = 0x4, scoped, tag = 'scoped memory for tpu_custom_call.1']
    #allocation7 [shape = 'u8[131072]{0}', space=vmem, size = 0x20000, scoped, tag = 'input window, operand 2, single buffered']
    #allocation8 [shape = 'u8[2048]{0}', space=vmem, size = 0x800, scoped, tag = 'input window, operand 3, single buffered']
    #allocation9 [shape = 's32[1]{0}', space=sflag, size = 0x4, scoped, tag = 'scoped memory for tpu_custom_call.1']
    #allocation10 [shape = 'u8[32768]{0}', space=vmem, size = 0x8000, scoped, tag = 'output window, operand 0']
    %9 = vsyncpa [#allocation3], 0
    %s10 = scalar_lea.sflag [#allocation3], 1
    %11 = vsyncpa %s10, 0
    %12 = vsyncpa [#allocation6], 0
    %13 = vsyncpa [#allocation9], 0
    %14 = vsyncpa [#allocation4], 0
    %s15 = scalar_lea.sflag [#allocation4], 1
    %16 = vsyncpa %s15, 0
    loop: start=0, step=1, limit=4
    $region2: #{tpu_custom_call.1} parent=1 // loop_pre_header
      _
    $region3: #{tpu_custom_call.1} parent=1 // loop_header
      %s18 = sphi 0, %s22
      %p19 = scmp.ge.s32.totalorder %s18, 4
      %s28 = sphi 0, %s30
      %s31 = sphi 0, %s28
      %s32 = sphi 0, %s31
      %s48 = sphi 0, %s32
      %s52 = sphi 0, %s52
      %s54 = sphi 0, %s52
      %s55 = sphi 0, %s54
      %s69 = sphi 0, %s55
      %s73 = sphi 0, %s73
      %s75 = sphi 0, %s73
      %s76 = sphi 0, %s75
      %s90 = sphi 0, %s76
      %s94 = sphi 0, %s94
      %s96 = sphi 0, %s94
      %s97 = sphi 0, %s96
      %s111 = sphi 0, %s97
      %s117 = sphi 0, %s119
      %s120 = sphi 0, %s117
      %s121 = sphi 0, %s120
      %s137 = sphi 0, %s121
    $region4: #{tpu_custom_call.1} parent=1 // loop_header_branch
      %21 = sbr.rel (%p19) target = $region8
    $region5: #{tpu_custom_call.1} parent=1 // loop_body
      %s23 = ssub.s32 %s18, 1
      %s24 = ssub.s32 %s18, 2
      %s25 = sadd.s32 %s18, 1
      %s26 = ssub.s32 %s18, %s25
      %p27 = scmp.eq.s32.totalorder %s26, 0
      %s29 = sadd.s32 %s28, 1
      %s30 = scalar_select %p27, %s28, %s29
      %p33 = pneg %p27
      %p34 = scmp.eq.s32.totalorder %s18, 1
      %p35 = por %p33, %p34
      %p36 = scmp.ne.s32.totalorder %s28, %s31
      %p37 = scmp.eq.s32.totalorder %s18, 0
      %p38 = por %p36, %p37
      %p39 = scmp.ne.s32.totalorder %s28, %s31
      %p40 = scmp.eq.s32.totalorder %s23, 1
      %p41 = por %p39, %p40
      %p42 = scmp.ne.s32.totalorder %s31, %s32
      %p43 = scmp.eq.s32.totalorder %s23, 0
      %p44 = por %p42, %p43
      %p45 = scmp.ne.s32.totalorder %s31, %s32
      %p46 = scmp.eq.s32.totalorder %s24, 1
      %p47 = por %p45, %p46
      %p49 = scmp.ne.s32.totalorder %s32, %s48
      %p50 = scmp.eq.s32.totalorder %s24, 0
      %p51 = por %p49, %p50
      %s53 = sadd.s32 %s52, 1
      %p56 = scmp.eq.s32.totalorder %s18, 1
      %p57 = scmp.ne.s32.totalorder %s52, %s54
      %p58 = scmp.eq.s32.totalorder %s18, 0
      %p59 = por %p57, %p58
      %p60 = scmp.ne.s32.totalorder %s52, %s54
      %p61 = scmp.eq.s32.totalorder %s23, 1
      %p62 = por %p60, %p61
      %p63 = scmp.ne.s32.totalorder %s54, %s55
      %p64 = scmp.eq.s32.totalorder %s23, 0
      %p65 = por %p63, %p64
      %p66 = scmp.ne.s32.totalorder %s54, %s55
      %p67 = scmp.eq.s32.totalorder %s24, 1
      %p68 = por %p66, %p67
      %p70 = scmp.ne.s32.totalorder %s55, %s69
      %p71 = scmp.eq.s32.totalorder %s24, 0
      %p72 = por %p70, %p71
      %s74 = sadd.s32 %s73, 1
      %p77 = scmp.eq.s32.totalorder %s18, 1
      %p78 = scmp.ne.s32.totalorder %s73, %s75
      %p79 = scmp.eq.s32.totalorder %s18, 0
      %p80 = por %p78, %p79
      %p81 = scmp.ne.s32.totalorder %s73, %s75
      %p82 = scmp.eq.s32.totalorder %s23, 1
      %p83 = por %p81, %p82
      %p84 = scmp.ne.s32.totalorder %s75, %s76
      %p85 = scmp.eq.s32.totalorder %s23, 0
      %p86 = por %p84, %p85
      %p87 = scmp.ne.s32.totalorder %s75, %s76
      %p88 = scmp.eq.s32.totalorder %s24, 1
      %p89 = por %p87, %p88
      %p91 = scmp.ne.s32.totalorder %s76, %s90
      %p92 = scmp.eq.s32.totalorder %s24, 0
      %p93 = por %p91, %p92
      %s95 = sadd.s32 %s94, 1
      %p98 = scmp.eq.s32.totalorder %s18, 1
      %p99 = scmp.ne.s32.totalorder %s94, %s96
      %p100 = scmp.eq.s32.totalorder %s18, 0
      %p101 = por %p99, %p100
      %p102 = scmp.ne.s32.totalorder %s94, %s96
      %p103 = scmp.eq.s32.totalorder %s23, 1
      %p104 = por %p102, %p103
      %p105 = scmp.ne.s32.totalorder %s96, %s97
      %p106 = scmp.eq.s32.totalorder %s23, 0
      %p107 = por %p105, %p106
      %p108 = scmp.ne.s32.totalorder %s96, %s97
      %p109 = scmp.eq.s32.totalorder %s24, 1
      %p110 = por %p108, %p109
      %p112 = scmp.ne.s32.totalorder %s97, %s111
      %p113 = scmp.eq.s32.totalorder %s24, 0
      %p114 = por %p112, %p113
      %s115 = ssub.s32 %s18, %s25
      %p116 = scmp.eq.s32.totalorder %s115, 0
      %s118 = sadd.s32 %s117, 1
      %s119 = scalar_select %p116, %s117, %s118
      %p122 = pneg %p116
      %p123 = scmp.eq.s32.totalorder %s18, 1
      %p124 = por %p122, %p123
      %p125 = scmp.ne.s32.totalorder %s117, %s120
      %p126 = scmp.eq.s32.totalorder %s18, 0
      %p127 = por %p125, %p126
      %p128 = scmp.ne.s32.totalorder %s117, %s120
      %p129 = scmp.eq.s32.totalorder %s23, 1
      %p130 = por %p128, %p129
      %p131 = scmp.ne.s32.totalorder %s120, %s121
      %p132 = scmp.eq.s32.totalorder %s23, 0
      %p133 = por %p131, %p132
      %p134 = scmp.ne.s32.totalorder %s120, %s121
      %p135 = scmp.eq.s32.totalorder %s24, 1
      %p136 = por %p134, %p135
      %p138 = scmp.ne.s32.totalorder %s121, %s137
      %p139 = scmp.eq.s32.totalorder %s24, 0
      %p140 = por %p138, %p139
      %p141 = scmp.le.s32.totalorder 1, %s18
      %p142 = scmp.lt.s32.totalorder %s18, 3
      %p143 = pnand %p141, %p142
      %p144 = pneg %p143
      // Predicated region
      $region9: #{tpu_custom_call.1} parent=5 // pred_check
        _
      $region10: #{tpu_custom_call.1} parent=5 // pred_check_branch
        %146 = sbr.rel (%p143) target = $region12
      $region11: #{tpu_custom_call.1} parent=5 // pred_region
        %s147 = ssub.s32 %s18, 1
        // Predicated region
        $region13: #{tpu_custom_call.1} parent=11 // pred_check
          %p148 = pneg %p65
        $region14: #{tpu_custom_call.1} parent=11 // pred_check_branch
          %150 = sbr.rel (%p148) target = $region16
        $region15: #{tpu_custom_call.1} parent=11 // pred_region
          %152 = vsyncadd [#allocation6], 0
          %s153 = sshll.u32 %s1, 4
          %s154 = int_to_ptr.hbm [resolvable:$true] %s153
          %s155 = sshll.u32 [#allocation5], 4
          %s156 = int_to_ptr.vmem [resolvable:$true] %s155
          %161 = dma.hbm_to_vmem [thread:$0]  %s154, 2048, %s156, [#allocation6], 128, 128, 8
        $region16: #{tpu_custom_call.1} parent=11 // pred_fallthru
          _
        // Predicated region
        $region17: #{tpu_custom_call.1} parent=11 // pred_check
          %p162 = pneg %p86
        $region18: #{tpu_custom_call.1} parent=11 // pred_check_branch
          %164 = sbr.rel (%p162) target = $region20
        $region19: #{tpu_custom_call.1} parent=11 // pred_region
          %166 = vsyncadd [#allocation6], 0
          %s167 = sshll.u32 %s2, 4
          %s168 = int_to_ptr.hbm [resolvable:$true] %s167
          %s169 = sshll.u32 [#allocation7], 4
          %s170 = int_to_ptr.vmem [resolvable:$true] %s169
          %175 = dma.hbm_to_vmem [thread:$0]  %s168, 4096, %s170, [#allocation6], 128, 128, 8
        $region20: #{tpu_custom_call.1} parent=11 // pred_fallthru
          _
        // Predicated region
        $region21: #{tpu_custom_call.1} parent=11 // pred_check
          %p176 = pneg %p107
        $region22: #{tpu_custom_call.1} parent=11 // pred_check_branch
          %178 = sbr.rel (%p176) target = $region24
        $region23: #{tpu_custom_call.1} parent=11 // pred_region
          %180 = vsyncadd [#allocation9], 0
          %s182 = sshll.u32 %s3, 4
          %s183 = int_to_ptr.hbm [resolvable:$true] %s182
          %s184 = sshll.u32 [#allocation8], 4
          %s185 = int_to_ptr.vmem [resolvable:$true] %s184
          %187 = dma.hbm_to_vmem [thread:$0]  %s183, 64, %s185, [#allocation9]
        $region24: #{tpu_custom_call.1} parent=11 // pred_fallthru
          _
      $region12: #{tpu_custom_call.1} parent=5 // pred_fallthru
        _
      %p188 = scmp.lt.s32.totalorder %s18, 2
      // Predicated region
      $region25: #{tpu_custom_call.1} parent=5 // pred_check
        %p189 = pneg %p188
      $region26: #{tpu_custom_call.1} parent=5 // pred_check_branch
        %191 = sbr.rel (%p189) target = $region28
      $region27: #{tpu_custom_call.1} parent=5 // pred_region
        // Predicated region
        $region29: #{tpu_custom_call.1} parent=27 // pred_check
          %p192 = pneg %p38
        $region30: #{tpu_custom_call.1} parent=27 // pred_check_branch
          %194 = sbr.rel (%p192) target = $region32
        $region31: #{tpu_custom_call.1} parent=27 // pred_region
          %s195 = sand.u32 %s28, 1
          %s196 = scalar_lea.sflag [#allocation3], %s195
          %s197 = sand.u32 %s28, 1
          %s198 = smul.addr %s197, 16
          %s199 = scalar_lea.vmem [#allocation2], %s198
          %s200 = smul.u32 2, %s18
          %202 = vsyncadd %s196, 0
          %s203 = smul.addr %s200, 8
          %s204 = scalar_lea.hbm %s0, %s203
          %s205 = sshll.u32 %s204, 4
          %s206 = int_to_ptr.hbm [resolvable:$true] %s205
          %s207 = sshll.u32 %s199, 4
          %s208 = int_to_ptr.vmem [resolvable:$true] %s207
          %213 = dma.hbm_to_vmem [thread:$0]  %s206, 256, %s208, %s196, 128, 128, 8
        $region32: #{tpu_custom_call.1} parent=27 // pred_fallthru
          _
      $region28: #{tpu_custom_call.1} parent=5 // pred_fallthru
        _
      %p214 = scmp.le.s32.totalorder 1, %s18
      %p215 = scmp.lt.s32.totalorder %s18, 3
      %p216 = pnand %p214, %p215
      %p217 = pneg %p216
      // Predicated region
      $region33: #{tpu_custom_call.1} parent=5 // pred_check
        _
      $region34: #{tpu_custom_call.1} parent=5 // pred_check_branch
        %219 = sbr.rel (%p216) target = $region36
      $region35: #{tpu_custom_call.1} parent=5 // pred_region
        %s220 = ssub.s32 %s18, 1
        %s221 = sand.u32 %s31, 1
        %s222 = scalar_lea.sflag [#allocation3], %s221
        %s223 = sand.u32 %s31, 1
        %s224 = smul.addr %s223, 16
        %s225 = scalar_lea.vmem [#allocation2], %s224
        // Predicated region
        $region37: #{tpu_custom_call.1} parent=35 // pred_check
          %p226 = pneg %p44
        $region38: #{tpu_custom_call.1} parent=35 // pred_check_branch
          %228 = sbr.rel (%p226) target = $region40
        $region39: #{tpu_custom_call.1} parent=35 // pred_region
          %230 = dma.done %s222, 256
        $region40: #{tpu_custom_call.1} parent=35 // pred_fallthru
          _
        // Predicated region
        $region41: #{tpu_custom_call.1} parent=35 // pred_check
          %p231 = pneg %p65
        $region42: #{tpu_custom_call.1} parent=35 // pred_check_branch
          %233 = sbr.rel (%p231) target = $region44
        $region43: #{tpu_custom_call.1} parent=35 // pred_region
          %235 = dma.done [#allocation6], 2048
        $region44: #{tpu_custom_call.1} parent=35 // pred_fallthru
          _
        // Predicated region
        $region45: #{tpu_custom_call.1} parent=35 // pred_check
          %p236 = pneg %p86
        $region46: #{tpu_custom_call.1} parent=35 // pred_check_branch
          %238 = sbr.rel (%p236) target = $region48
        $region47: #{tpu_custom_call.1} parent=35 // pred_region
          %240 = dma.done [#allocation6], 4096
        $region48: #{tpu_custom_call.1} parent=35 // pred_fallthru
          _
        // Predicated region
        $region49: #{tpu_custom_call.1} parent=35 // pred_check
          %p241 = pneg %p107
        $region50: #{tpu_custom_call.1} parent=35 // pred_check_branch
          %243 = sbr.rel (%p241) target = $region52
        $region51: #{tpu_custom_call.1} parent=35 // pred_region
          %245 = dma.done [#allocation9], 64
        $region52: #{tpu_custom_call.1} parent=35 // pred_fallthru
          _
        %s246 = sand.u32 %s31, 1
        %s247 = scalar_lea.sflag [#allocation3], %s246
        %s248 = sand.u32 %s31, 1
        %s249 = smul.addr %s248, 16
        %s250 = scalar_lea.vmem [#allocation2], %s249
        %p251 = pneg %p44
        %p252 = pneg %p41
        %p253 = pneg %p65
        %p254 = pneg %p62
        %p255 = pneg %p86
        %p256 = pneg %p83
        %p257 = pneg %p107
        %p258 = pneg %p104
        %p259 = pneg %p133
        %p260 = pneg %p130
        %s261 = sand.u32 %s120, 1
        %s262 = scalar_lea.sflag [#allocation4], %s261
        %s263 = sand.u32 %s120, 1
        %s264 = smul.addr %s263, 32
        %s265 = scalar_lea.vmem [#allocation10], %s264
        %s266 = smul.u32 2, %s23
        %s267 = smul.u32 2, %s23
        %v268 = vld [vmem:[%s225] sm:$0xff]
        %v269 = vld [vmem:[%s225 + $0x8] sm:$0xff]
        %v270 = vpack.c.bf16 %v269, %v268
        %v271 = vld [vmem:[#allocation5] sm:$0xff]
        %v272 = vld [vmem:[#allocation5 + $0x8] sm:$0xff]
        %v273 = vld [vmem:[#allocation5 + $0x10] sm:$0xff]
        %v274 = vld [vmem:[#allocation5 + $0x18] sm:$0xff]
        %v275 = vld [vmem:[#allocation5 + $0x20] sm:$0xff]
        %v276 = vld [vmem:[#allocation5 + $0x28] sm:$0xff]
        %v277 = vld [vmem:[#allocation5 + $0x30] sm:$0xff]
        %v278 = vld [vmem:[#allocation5 + $0x38] sm:$0xff]
        %v279 = vld [vmem:[#allocation5 + $0x40] sm:$0xff]
        %v280 = vld [vmem:[#allocation5 + $0x48] sm:$0xff]
        %v281 = vld [vmem:[#allocation5 + $0x50] sm:$0xff]
        %v282 = vld [vmem:[#allocation5 + $0x58] sm:$0xff]
        %v283 = vld [vmem:[#allocation5 + $0x60] sm:$0xff]
        %v284 = vld [vmem:[#allocation5 + $0x68] sm:$0xff]
        %v285 = vld [vmem:[#allocation5 + $0x70] sm:$0xff]
        %v286 = vld [vmem:[#allocation5 + $0x78] sm:$0xff]
        %v287 = vld [vmem:[#allocation8] ss:$2 sm:$0x3]
        %v289 = vperm.slane %v287, 0
        %v290 = vperm.slane %v287, 1
        %v309 = vunpack.c.l.b16 %v271
        %v310 = vunpack.c.h.b16 %v271
        %v311 = vunpack.c.l.b16 %v272
        %v312 = vunpack.c.h.b16 %v272
        %v313 = vunpack.c.l.b16 %v273
        %v314 = vunpack.c.h.b16 %v273
        %v315 = vunpack.c.l.b16 %v274
        %v316 = vunpack.c.h.b16 %v274
        %v317 = vunpack.c.l.b16 %v275
        %v318 = vunpack.c.h.b16 %v275
        %v319 = vunpack.c.l.b16 %v276
        %v320 = vunpack.c.h.b16 %v276
        %v321 = vunpack.c.l.b16 %v277
        %v322 = vunpack.c.h.b16 %v277
        %v323 = vunpack.c.l.b16 %v278
        %v324 = vunpack.c.h.b16 %v278
        %v325 = vunpack.c.l.b16 %v279
        %v326 = vunpack.c.h.b16 %v279
        %v327 = vunpack.c.l.b16 %v280
        %v328 = vunpack.c.h.b16 %v280
        %v329 = vunpack.c.l.b16 %v281
        %v330 = vunpack.c.h.b16 %v281
        %v331 = vunpack.c.l.b16 %v282
        %v332 = vunpack.c.h.b16 %v282
        %v333 = vunpack.c.l.b16 %v283
        %v334 = vunpack.c.h.b16 %v283
        %v335 = vunpack.c.l.b16 %v284
        %v336 = vunpack.c.h.b16 %v284
        %v337 = vunpack.c.l.b16 %v285
        %v338 = vunpack.c.h.b16 %v285
        %v339 = vunpack.c.l.b16 %v286
        %v340 = vunpack.c.h.b16 %v286
        %v341 = vpack.c.b16 %v311, %v309
        %v342 = vpack.c.b16 %v312, %v310
        %v343 = vpack.c.b16 %v315, %v313
        %v344 = vpack.c.b16 %v316, %v314
        %v345 = vpack.c.b16 %v319, %v317
        %v346 = vpack.c.b16 %v320, %v318
        %v347 = vpack.c.b16 %v323, %v321
        %v348 = vpack.c.b16 %v324, %v322
        %v349 = vpack.c.b16 %v327, %v325
        %v350 = vpack.c.b16 %v328, %v326
        %v351 = vpack.c.b16 %v331, %v329
        %v352 = vpack.c.b16 %v332, %v330
        %v353 = vpack.c.b16 %v335, %v333
        %v354 = vpack.c.b16 %v336, %v334
        %v355 = vpack.c.b16 %v339, %v337
        %v356 = vpack.c.b16 %v340, %v338
        %373 = vmatpush.bf16.msra.mxu0 %v355
        %374 = vmatpush.bf16.msra.mxu0 %v353
        %375 = vmatpush.bf16.msra.mxu0 %v351
        %376 = vmatpush.bf16.msra.mxu0 %v349
        %377 = vmatpush.bf16.msra.mxu0 %v347
        %378 = vmatpush.bf16.msra.mxu0 %v345
        %379 = vmatpush.bf16.msra.mxu0 %v343
        %380 = vmatpush.bf16.msra.mxu0 %v341
        %381 = vmatmul.bf16.gmra.mxu0 %v270
        %v382 = vpop.f32.mrf.mxu0
        %v383 = vadd.f32 %v289, %v382
        %v384 = vpop.f32.mrf.mxu0
        %v385 = vadd.f32 %v289, %v384
        %386 = vdwg.mxu0
        %387 = vmatpush.bf16.msra.mxu0 %v356
        %388 = vmatpush.bf16.msra.mxu0 %v354
        %389 = vmatpush.bf16.msra.mxu0 %v352
        %390 = vmatpush.bf16.msra.mxu0 %v350
        %391 = vmatpush.bf16.msra.mxu0 %v348
        %392 = vmatpush.bf16.msra.mxu0 %v346
        %393 = vmatpush.bf16.msra.mxu0 %v344
        %394 = vmatpush.bf16.msra.mxu0 %v342
        %395 = vmatmul.bf16.gmra.mxu0 %v270
        %v396 = vpop.f32.mrf.mxu0
        %v397 = vadd.f32 %v290, %v396
        %v398 = vpop.f32.mrf.mxu0
        %v399 = vadd.f32 %v290, %v398
        %400 = vdwg.mxu0
        %v401 = vmax.f32 %v383, 0.0
        %v402 = vmax.f32 %v397, 0.0
        %v403 = vmax.f32 %v385, 0.0
        %v404 = vmax.f32 %v399, 0.0
        %v405 = vpack.c.bf16 %v403, %v401
        %v406 = vpack.c.bf16 %v404, %v402
        %v407 = vld [vmem:[#allocation7] sm:$0xff]
        %v408 = vld [vmem:[#allocation7 + $0x8] sm:$0xff]
        %v409 = vld [vmem:[#allocation7 + $0x10] sm:$0xff]
        %v410 = vld [vmem:[#allocation7 + $0x18] sm:$0xff]
        %v411 = vld [vmem:[#allocation7 + $0x20] sm:$0xff]
        %v412 = vld [vmem:[#allocation7 + $0x28] sm:$0xff]
        %v413 = vld [vmem:[#allocation7 + $0x30] sm:$0xff]
        %v414 = vld [vmem:[#allocation7 + $0x38] sm:$0xff]
        %v415 = vld [vmem:[#allocation7 + $0x40] sm:$0xff]
        %v416 = vld [vmem:[#allocation7 + $0x48] sm:$0xff]
        %v417 = vld [vmem:[#allocation7 + $0x50] sm:$0xff]
        %v418 = vld [vmem:[#allocation7 + $0x58] sm:$0xff]
        %v419 = vld [vmem:[#allocation7 + $0x60] sm:$0xff]
        %v420 = vld [vmem:[#allocation7 + $0x68] sm:$0xff]
        %v421 = vld [vmem:[#allocation7 + $0x70] sm:$0xff]
        %v422 = vld [vmem:[#allocation7 + $0x78] sm:$0xff]
        %v423 = vld [vmem:[#allocation7 + $0x80] sm:$0xff]
        %v424 = vld [vmem:[#allocation7 + $0x88] sm:$0xff]
        %v425 = vld [vmem:[#allocation7 + $0x90] sm:$0xff]
        %v426 = vld [vmem:[#allocation7 + $0x98] sm:$0xff]
        %v427 = vld [vmem:[#allocation7 + $0xa0] sm:$0xff]
        %v428 = vld [vmem:[#allocation7 + $0xa8] sm:$0xff]
        %v429 = vld [vmem:[#allocation7 + $0xb0] sm:$0xff]
        %v430 = vld [vmem:[#allocation7 + $0xb8] sm:$0xff]
        %v431 = vld [vmem:[#allocation7 + $0xc0] sm:$0xff]
        %v432 = vld [vmem:[#allocation7 + $0xc8] sm:$0xff]
        %v433 = vld [vmem:[#allocation7 + $0xd0] sm:$0xff]
        %v434 = vld [vmem:[#allocation7 + $0xd8] sm:$0xff]
        %v435 = vld [vmem:[#allocation7 + $0xe0] sm:$0xff]
        %v436 = vld [vmem:[#allocation7 + $0xe8] sm:$0xff]
        %v437 = vld [vmem:[#allocation7 + $0xf0] sm:$0xff]
        %v438 = vld [vmem:[#allocation7 + $0xf8] sm:$0xff]
        %s439 = scalar_lea.vmem [#allocation8], 1
        %v440 = vld [vmem:[%s439] ss:$2 sm:$0x3]
        %v442 = vperm.slane %v440, 0
        %v443 = vperm.slane %v440, 1
        %v478 = vunpack.c.l.b16 %v407
        %v479 = vunpack.c.h.b16 %v407
        %v480 = vunpack.c.l.b16 %v408
        %v481 = vunpack.c.h.b16 %v408
        %v482 = vunpack.c.l.b16 %v409
        %v483 = vunpack.c.h.b16 %v409
        %v484 = vunpack.c.l.b16 %v410
        %v485 = vunpack.c.h.b16 %v410
        %v486 = vunpack.c.l.b16 %v411
        %v487 = vunpack.c.h.b16 %v411
        %v488 = vunpack.c.l.b16 %v412
        %v489 = vunpack.c.h.b16 %v412
        %v490 = vunpack.c.l.b16 %v413
        %v491 = vunpack.c.h.b16 %v413
        %v492 = vunpack.c.l.b16 %v414
        %v493 = vunpack.c.h.b16 %v414
        %v494 = vunpack.c.l.b16 %v415
        %v495 = vunpack.c.h.b16 %v415
        %v496 = vunpack.c.l.b16 %v416
        %v497 = vunpack.c.h.b16 %v416
        %v498 = vunpack.c.l.b16 %v417
        %v499 = vunpack.c.h.b16 %v417
        %v500 = vunpack.c.l.b16 %v418
        %v501 = vunpack.c.h.b16 %v418
        %v502 = vunpack.c.l.b16 %v419
        %v503 = vunpack.c.h.b16 %v419
        %v504 = vunpack.c.l.b16 %v420
        %v505 = vunpack.c.h.b16 %v420
        %v506 = vunpack.c.l.b16 %v421
        %v507 = vunpack.c.h.b16 %v421
        %v508 = vunpack.c.l.b16 %v422
        %v509 = vunpack.c.h.b16 %v422
        %v510 = vunpack.c.l.b16 %v423
        %v511 = vunpack.c.h.b16 %v423
        %v512 = vunpack.c.l.b16 %v424
        %v513 = vunpack.c.h.b16 %v424
        %v514 = vunpack.c.l.b16 %v425
        %v515 = vunpack.c.h.b16 %v425
        %v516 = vunpack.c.l.b16 %v426
        %v517 = vunpack.c.h.b16 %v426
        %v518 = vunpack.c.l.b16 %v427
        %v519 = vunpack.c.h.b16 %v427
        %v520 = vunpack.c.l.b16 %v428
        %v521 = vunpack.c.h.b16 %v428
        %v522 = vunpack.c.l.b16 %v429
        %v523 = vunpack.c.h.b16 %v429
        %v524 = vunpack.c.l.b16 %v430
        %v525 = vunpack.c.h.b16 %v430
        %v526 = vunpack.c.l.b16 %v431
        %v527 = vunpack.c.h.b16 %v431
        %v528 = vunpack.c.l.b16 %v432
        %v529 = vunpack.c.h.b16 %v432
        %v530 = vunpack.c.l.b16 %v433
        %v531 = vunpack.c.h.b16 %v433
        %v532 = vunpack.c.l.b16 %v434
        %v533 = vunpack.c.h.b16 %v434
        %v534 = vunpack.c.l.b16 %v435
        %v535 = vunpack.c.h.b16 %v435
        %v536 = vunpack.c.l.b16 %v436
        %v537 = vunpack.c.h.b16 %v436
        %v538 = vunpack.c.l.b16 %v437
        %v539 = vunpack.c.h.b16 %v437
        %v540 = vunpack.c.l.b16 %v438
        %v541 = vunpack.c.h.b16 %v438
        %v542 = vpack.c.b16 %v480, %v478
        %v543 = vpack.c.b16 %v481, %v479
        %v544 = vpack.c.b16 %v484, %v482
        %v545 = vpack.c.b16 %v485, %v483
        %v546 = vpack.c.b16 %v488, %v486
        %v547 = vpack.c.b16 %v489, %v487
        %v548 = vpack.c.b16 %v492, %v490
        %v549 = vpack.c.b16 %v493, %v491
        %v550 = vpack.c.b16 %v496, %v494
        %v551 = vpack.c.b16 %v497, %v495
        %v552 = vpack.c.b16 %v500, %v498
        %v553 = vpack.c.b16 %v501, %v499
        %v554 = vpack.c.b16 %v504, %v502
        %v555 = vpack.c.b16 %v505, %v503
        %v556 = vpack.c.b16 %v508, %v506
        %v557 = vpack.c.b16 %v509, %v507
        %v558 = vpack.c.b16 %v512, %v510
        %v559 = vpack.c.b16 %v513, %v511
        %v560 = vpack.c.b16 %v516, %v514
        %v561 = vpack.c.b16 %v517, %v515
        %v562 = vpack.c.b16 %v520, %v518
        %v563 = vpack.c.b16 %v521, %v519
        %v564 = vpack.c.b16 %v524, %v522
        %v565 = vpack.c.b16 %v525, %v523
        %v566 = vpack.c.b16 %v528, %v526
        %v567 = vpack.c.b16 %v529, %v527
        %v568 = vpack.c.b16 %v532, %v530
        %v569 = vpack.c.b16 %v533, %v531
        %v570 = vpack.c.b16 %v536, %v534
        %v571 = vpack.c.b16 %v537, %v535
        %v572 = vpack.c.b16 %v540, %v538
        %v573 = vpack.c.b16 %v541, %v539
        %606 = vmatpush.bf16.msra.mxu0 %v556
        %607 = vmatpush.bf16.msra.mxu0 %v554
        %608 = vmatpush.bf16.msra.mxu0 %v552
        %609 = vmatpush.bf16.msra.mxu0 %v550
        %610 = vmatpush.bf16.msra.mxu0 %v548
        %611 = vmatpush.bf16.msra.mxu0 %v546
        %612 = vmatpush.bf16.msra.mxu0 %v544
        %613 = vmatpush.bf16.msra.mxu0 %v542
        %614 = vmatmul.bf16.gmra.mxu0 %v405
        %v615 = vpop.f32.mrf.mxu0
        %v616 = vadd.f32 %v442, %v615
        %v617 = vpop.f32.mrf.mxu0
        %v618 = vadd.f32 %v442, %v617
        %619 = vdwg.mxu0
        %620 = vmatpush.bf16.msra.mxu0 %v572
        %621 = vmatpush.bf16.msra.mxu0 %v570
        %622 = vmatpush.bf16.msra.mxu0 %v568
        %623 = vmatpush.bf16.msra.mxu0 %v566
        %624 = vmatpush.bf16.msra.mxu0 %v564
        %625 = vmatpush.bf16.msra.mxu0 %v562
        %626 = vmatpush.bf16.msra.mxu0 %v560
        %627 = vmatpush.bf16.msra.mxu0 %v558
        %628 = vmatmul.bf16.gmra.mxu0 %v406
        %v629 = vpop.f32.mrf.mxu0
        %v630 = vadd.f32 %v616, %v629
        %v631 = vpop.f32.mrf.mxu0
        %v632 = vadd.f32 %v618, %v631
        %633 = vdwg.mxu0
        %634 = vmatpush.bf16.msra.mxu0 %v557
        %635 = vmatpush.bf16.msra.mxu0 %v555
        %636 = vmatpush.bf16.msra.mxu0 %v553
        %637 = vmatpush.bf16.msra.mxu0 %v551
        %638 = vmatpush.bf16.msra.mxu0 %v549
        %639 = vmatpush.bf16.msra.mxu0 %v547
        %640 = vmatpush.bf16.msra.mxu0 %v545
        %641 = vmatpush.bf16.msra.mxu0 %v543
        %642 = vmatmul.bf16.gmra.mxu0 %v405
        %v643 = vpop.f32.mrf.mxu0
        %v644 = vadd.f32 %v443, %v643
        %v645 = vpop.f32.mrf.mxu0
        %v646 = vadd.f32 %v443, %v645
        %647 = vdwg.mxu0
        %648 = vmatpush.bf16.msra.mxu0 %v573
        %649 = vmatpush.bf16.msra.mxu0 %v571
        %650 = vmatpush.bf16.msra.mxu0 %v569
        %651 = vmatpush.bf16.msra.mxu0 %v567
        %652 = vmatpush.bf16.msra.mxu0 %v565
        %653 = vmatpush.bf16.msra.mxu0 %v563
        %654 = vmatpush.bf16.msra.mxu0 %v561
        %655 = vmatpush.bf16.msra.mxu0 %v559
        %656 = vmatmul.bf16.gmra.mxu0 %v406
        %v657 = vpop.f32.mrf.mxu0
        %v658 = vadd.f32 %v644, %v657
        %v659 = vpop.f32.mrf.mxu0
        %v660 = vadd.f32 %v646, %v659
        %661 = vdwg.mxu0
        %662 = vst [vmem:[%s265] sm:$0xff] %v630
        %663 = vst [vmem:[%s265 + $0x8] sm:$0xff] %v658
        %664 = vst [vmem:[%s265 + $0x10] sm:$0xff] %v632
        %665 = vst [vmem:[%s265 + $0x18] sm:$0xff] %v660
        %s666 = sand.u32 %s120, 1
        %s667 = scalar_lea.sflag [#allocation4], %s666
        %s668 = sand.u32 %s120, 1
        %s669 = smul.addr %s668, 32
        %s670 = scalar_lea.vmem [#allocation10], %s669
        // Predicated region
        $region53: #{tpu_custom_call.1} parent=35 // pred_check
          %p671 = pneg %p130
        $region54: #{tpu_custom_call.1} parent=35 // pred_check_branch
          %673 = sbr.rel (%p671) target = $region56
        $region55: #{tpu_custom_call.1} parent=35 // pred_region
          %s674 = smul.u32 2, %s23
          %676 = vsyncadd %s667, 0
          %s677 = smul.addr %s674, 2
          %s678 = smul.addr %s677, 8
          %s679 = scalar_lea.hbm %s4, %s678
          %s680 = sshll.u32 %s670, 4
          %s681 = int_to_ptr.vmem [resolvable:$true] %s680
          %s682 = sshll.u32 %s679, 4
          %s683 = int_to_ptr.hbm [resolvable:$true] %s682
          %688 = dma.vmem_to_hbm [thread:$0]  %s681, 512, %s683, %s667, 256, 256, 16
        $region56: #{tpu_custom_call.1} parent=35 // pred_fallthru
          _
      $region36: #{tpu_custom_call.1} parent=5 // pred_fallthru
        _
      %p689 = scmp.le.s32.totalorder 2, %s18
      // Predicated region
      $region57: #{tpu_custom_call.1} parent=5 // pred_check
        %p690 = pneg %p689
      $region58: #{tpu_custom_call.1} parent=5 // pred_check_branch
        %692 = sbr.rel (%p690) target = $region60
      $region59: #{tpu_custom_call.1} parent=5 // pred_region
        %s693 = ssub.s32 %s18, 2
        // Predicated region
        $region61: #{tpu_custom_call.1} parent=59 // pred_check
          %p694 = pneg %p136
        $region62: #{tpu_custom_call.1} parent=59 // pred_check_branch
          %696 = sbr.rel (%p694) target = $region64
        $region63: #{tpu_custom_call.1} parent=59 // pred_region
          %s697 = sand.u32 %s121, 1
          %s698 = scalar_lea.sflag [#allocation4], %s697
          %s699 = sand.u32 %s121, 1
          %s700 = smul.addr %s699, 32
          %s701 = scalar_lea.vmem [#allocation10], %s700
          %703 = dma.done %s698, 512
        $region64: #{tpu_custom_call.1} parent=59 // pred_fallthru
          _
      $region60: #{tpu_custom_call.1} parent=5 // pred_fallthru
        _
    $region6: #{tpu_custom_call.1} parent=1 // loop_footer
      %s22 = sadd.s32 1, %s18
    $region7: #{tpu_custom_call.1} parent=1 // loop_footer_branch
      %17 = sbr.rel target = $region3
    $region8: #{tpu_custom_call.1} parent=1 // loop_exit
      _
    %704 = vsyncpa [#allocation3], 1
    %s705 = scalar_lea.sflag [#allocation3], 1
    %706 = vsyncpa %s705, 1
    %707 = vsyncpa [#allocation6], 1
    %708 = vsyncpa [#allocation9], 1
    %709 = vsyncpa [#allocation4], 1
    %s710 = scalar_lea.sflag [#allocation4], 1
    %711 = vsyncpa %s710, 1

</llo_original>
